<compile_context>
chip_gen: v7x
topology: tpu7x:2x2x1
jax: 0.10.0
libtpu: 0.0.40
codegen_flags: <defaults>
</compile_context>

<pallas_src>
import functools
import numpy as np
import jax
import jax.numpy as jnp
from jax import lax
from jax.experimental import pallas as pl
from jax.experimental.pallas import tpu as pltpu


def _round_up(x, m):
    return ((x + m - 1) // m) * m


# ----------------------------------------------------------------------------- kernel
def actor_critic_kernel(obs_ref, hx_ref,
                        w_ih_ref, w_hh_ref, b_gru_ref,
                        w_hid_ref, w_heads_ref, w_out_ref, b_mlp_ref,
                        out_ref, hnew_ref):
    T = obs_ref.shape[0]
    H = hx_ref.shape[-1]
    Hh = w_hid_ref.shape[1]
    OUT_W = out_ref.shape[-1]

    # Weights / biases loaded once; they stay resident in VMEM for all T steps.
    w_ih = w_ih_ref[...]                     # (D, 3H)
    w_hh = w_hh_ref[...]                     # (H, 3H)
    b_ih = b_gru_ref[0:1, :]                 # (1, 3H)
    b_hh = b_gru_ref[1:2, :]                 # (1, 3H)
    w_hid = w_hid_ref[...]                   # (H, Hh)
    w_heads = w_heads_ref[...]               # (Hh, 2Hh)   = [W_pol | W_val]
    w_out = w_out_ref[...]                   # (2Hh, OUT_W) block-diag(W_pi, W_v), lane-padded
    b_hid = b_mlp_ref[0:1, 0:Hh]
    b_heads = b_mlp_ref[1:2, 0:2 * Hh]
    b_out = b_mlp_ref[2:3, 0:OUT_W]

    def step(t, h):
        x = obs_ref[t]                                                # (B, D)

        # ---- GRU single step (PyTorch gate order r, z, n) ----
        gi = jnp.dot(x, w_ih, preferred_element_type=jnp.float32) + b_ih
        gh = jnp.dot(h, w_hh, preferred_element_type=jnp.float32) + b_hh
        r = jax.nn.sigmoid(gi[:, 0:H] + gh[:, 0:H])
        z = jax.nn.sigmoid(gi[:, H:2 * H] + gh[:, H:2 * H])
        n = jnp.tanh(gi[:, 2 * H:3 * H] + r * gh[:, 2 * H:3 * H])
        h_new = (1.0 - z) * n + z * h

        # ---- Fused policy/value heads ----
        h1 = jax.nn.relu(
            jnp.dot(h_new, w_hid, preferred_element_type=jnp.float32) + b_hid)
        hpv = jax.nn.relu(
            jnp.dot(h1, w_heads, preferred_element_type=jnp.float32) + b_heads)
        # [logits | value | zero-pad] -> one lane-dense (B, OUT_W) store.
        out_ref[t] = jnp.dot(hpv, w_out, preferred_element_type=jnp.float32) + b_out
        return h_new

    h_final = lax.fori_loop(0, T, step, hx_ref[...], unroll=(T <= 8))
    hnew_ref[...] = h_final


# ----------------------------------------------------------------------------- params
def init_params(key, obs_dim, h_rec, h_hidden, n_actions):
    """Orthogonal init mirroring the module's __init__ (biases zero)."""
    ortho = jax.nn.initializers.orthogonal
    ks = jax.random.split(key, 8)
    g2 = float(np.sqrt(2.0))
    f32 = jnp.float32

    # nn.GRU weights stored transposed: (in, 3H).
    w_ih = ortho(scale=g2)(ks[0], (3 * h_rec, obs_dim), f32).T
    w_hh = ortho(scale=g2)(ks[1], (3 * h_rec, h_rec), f32).T
    w_hid = ortho(scale=g2)(ks[2], (h_hidden, h_rec), f32).T
    w_pol = ortho(scale=g2)(ks[3], (h_hidden, h_hidden), f32).T
    w_val = ortho(scale=g2)(ks[4], (h_hidden, h_hidden), f32).T
    w_pi = ortho(scale=float(np.sqrt(0.01)))(ks[5], (n_actions, h_hidden), f32).T
    w_v = ortho(scale=1.0)(ks[6], (1, h_hidden), f32).T

    return dict(
        w_ih=w_ih, w_hh=w_hh,
        b_ih=jnp.zeros((1, 3 * h_rec), f32), b_hh=jnp.zeros((1, 3 * h_rec), f32),
        w_hid=w_hid, b_hid=jnp.zeros((1, h_hidden), f32),
        w_pol=w_pol, b_pol=jnp.zeros((1, h_hidden), f32),
        w_val=w_val, b_val=jnp.zeros((1, h_hidden), f32),
        w_pi=w_pi, b_pi=jnp.zeros((1, n_actions), f32),
        w_v=w_v, b_v=jnp.zeros((1, 1), f32),
    )


def pack_params(params, n_actions):
    """Build fused / packed operands consumed by the kernel (done once, reused)."""
    A = n_actions
    Hh = params["w_hid"].shape[1]
    OUT_W = _round_up(A + 1, 128)                 # lane-dense packed [logits|value|pad]
    W = max(2 * Hh, OUT_W)
    f32 = jnp.float32

    b_gru = jnp.concatenate([params["b_ih"], params["b_hh"]], axis=0)      # (2, 3H)
    w_heads = jnp.concatenate([params["w_pol"], params["w_val"]], axis=1)  # (Hh, 2Hh)

    w_out = jnp.zeros((2 * Hh, OUT_W), f32)
    w_out = w_out.at[0:Hh, 0:A].set(params["w_pi"])
    w_out = w_out.at[Hh:2 * Hh, A:A + 1].set(params["w_v"])

    b_mlp = jnp.zeros((3, W), f32)
    b_mlp = b_mlp.at[0, 0:Hh].set(params["b_hid"][0])
    b_mlp = b_mlp.at[1, 0:Hh].set(params["b_pol"][0])
    b_mlp = b_mlp.at[1, Hh:2 * Hh].set(params["b_val"][0])
    b_mlp = b_mlp.at[2, 0:A].set(params["b_pi"][0])
    b_mlp = b_mlp.at[2, A].set(params["b_v"][0, 0])

    return dict(w_ih=params["w_ih"], w_hh=params["w_hh"], b_gru=b_gru,
                w_hid=params["w_hid"], w_heads=w_heads, w_out=w_out, b_mlp=b_mlp)


# ----------------------------------------------------------------------------- forward
@functools.partial(jax.jit, static_argnames=("n_actions", "sequence_length"))
def actor_critic_forward(obs, recurrent_cell, packed, n_actions, sequence_length=1):
    """obs: (B, D) [seq_len==1] or (N*T, D) [seq_len==T]; recurrent_cell: (1, B, H)."""
    D = obs.shape[-1]
    H = recurrent_cell.shape[-1]
    Hh = packed["w_hid"].shape[1]
    OUT_W = packed["w_out"].shape[1]
    A = n_actions

    if sequence_length == 1:
        x_seq = obs[None]                                              # (1, B, D)
    else:
        N = obs.shape[0] // sequence_length
        x_seq = obs.reshape(N, sequence_length, D).transpose(1, 0, 2)  # (T, N, D)
    T, B = x_seq.shape[0], x_seq.shape[1]
    hx = recurrent_cell[0]                                             # (B, H)

    # Pad batch to a multiple of 8 (sublane tile) for vreg occupancy.
    B_pad = max(8, _round_up(B, 8))
    if B_pad != B:
        x_seq = jnp.pad(x_seq, ((0, 0), (0, B_pad - B), (0, 0)))
        hx = jnp.pad(hx, ((0, B_pad - B), (0, 0)))

    args = (x_seq, hx, packed["w_ih"], packed["w_hh"], packed["b_gru"],
            packed["w_hid"], packed["w_heads"], packed["w_out"], packed["b_mlp"])

    flops = 2 * T * B_pad * (D * 3 * H + H * 3 * H + H * Hh + Hh * 2 * Hh + 2 * Hh * OUT_W)
    bytes_accessed = sum(int(np.prod(a.shape)) * 4 for a in args) \
        + (T * B_pad * OUT_W + B_pad * H) * 4

    vmem = pl.BlockSpec(memory_space=pltpu.MemorySpace.VMEM)
    out, h_new = pl.pallas_call(
        actor_critic_kernel,
        out_shape=(
            jax.ShapeDtypeStruct((T, B_pad, OUT_W), jnp.float32),
            jax.ShapeDtypeStruct((B_pad, H), jnp.float32),
        ),
        in_specs=[vmem] * len(args),
        out_specs=(vmem, vmem),
        input_output_aliases={1: 1},          # hx buffer reused for the new hidden state
        cost_estimate=pl.CostEstimate(
            flops=flops,
            transcendentals=3 * T * B_pad * H,
            bytes_accessed=bytes_accessed),
    )(*args)

    h_new = h_new[:B]
    if sequence_length == 1:
        flat = out[0, :B]                                              # (B, OUT_W)
    else:
        flat = out[:, :B].transpose(1, 0, 2).reshape(B * sequence_length, OUT_W)
    logits = flat[:, :A]
    value = flat[:, A]
    # TODO(synk): torch.distributions.Categorical is returned as raw logits; sampling /
    # log_prob are plain-JAX ops (jax.nn.log_softmax) on the host side.
    return logits, value, h_new[None]


# ----------------------------------------------------------------------------- reference
def reference_forward(obs, recurrent_cell, params, sequence_length=1):
    """Pure-JAX mirror of the PyTorch forward (for correctness checking)."""
    D = obs.shape[-1]
    hi = jax.lax.Precision.HIGHEST
    if sequence_length == 1:
        x_seq = obs[None]
    else:
        N = obs.shape[0] // sequence_length
        x_seq = obs.reshape(N, sequence_length, D).transpose(1, 0, 2)
    h = recurrent_cell[0]
    H = h.shape[-1]
    hs = []
    for t in range(x_seq.shape[0]):
        x = x_seq[t]
        gi = jnp.dot(x, params["w_ih"], precision=hi) + params["b_ih"]
        gh = jnp.dot(h, params["w_hh"], precision=hi) + params["b_hh"]
        r = jax.nn.sigmoid(gi[:, :H] + gh[:, :H])
        z = jax.nn.sigmoid(gi[:, H:2 * H] + gh[:, H:2 * H])
        n = jnp.tanh(gi[:, 2 * H:] + r * gh[:, 2 * H:])
        h = (1.0 - z) * n + z * h
        hs.append(h)
    hcat = jnp.stack(hs, 0)                                            # (T, B, H)
    if sequence_length == 1:
        feats = hcat[0]
    else:
        feats = hcat.transpose(1, 0, 2).reshape(-1, H)
    h1 = jax.nn.relu(jnp.dot(feats, params["w_hid"], precision=hi) + params["b_hid"])
    hp = jax.nn.relu(jnp.dot(h1, params["w_pol"], precision=hi) + params["b_pol"])
    hv = jax.nn.relu(jnp.dot(h1, params["w_val"], precision=hi) + params["b_val"])
    logits = jnp.dot(hp, params["w_pi"], precision=hi) + params["b_pi"]
    value = (jnp.dot(hv, params["w_v"], precision=hi) + params["b_v"]).reshape(-1)
    return logits, value, h[None]


# ----------------------------------------------------------------------------- demo
if __name__ == "__main__":
    B = 2           # batch (num sequences)
    OBS_DIM = 16    # 1-D observation space -> encoder is identity
    H_REC = 32      # recurrence["hidden_state_size"]
    H_HID = 32      # config["hidden_layer_size"]
    N_ACT = 4       # action_space_shape[0]
    SEQ_T = 8       # sequence length for the in-kernel time-loop path

    key = jax.random.PRNGKey(0)
    k_obs, k_par, k_seq = jax.random.split(key, 3)
    params = init_params(k_par, OBS_DIM, H_REC, H_HID, N_ACT)
    packed = pack_params(params, N_ACT)

    # ---- sequence_length == 1 (single GRU step) ----
    obs = jax.random.normal(k_obs, (B, OBS_DIM), jnp.float32)
    cell = jnp.zeros((1, B, H_REC), jnp.float32)           # init_recurrent_cell_states
    logits, value, new_cell = actor_critic_forward(obs, cell, packed, N_ACT,
                                                   sequence_length=1)
    jax.block_until_ready((logits, value, new_cell))
    assert logits.shape == (B, N_ACT)
    assert value.shape == (B,)
    assert new_cell.shape == (1, B, H_REC)

    ref_l, ref_v, ref_c = reference_forward(obs, cell, params, sequence_length=1)
    np.testing.assert_allclose(np.asarray(logits), np.asarray(ref_l), atol=2e-2, rtol=2e-2)
    np.testing.assert_allclose(np.asarray(value), np.asarray(ref_v), atol=2e-2, rtol=2e-2)
    np.testing.assert_allclose(np.asarray(new_cell), np.asarray(ref_c), atol=2e-2, rtol=2e-2)

    # ---- sequence_length > 1 (T GRU steps inside ONE kernel call) ----
    obs_seq = jax.random.normal(k_seq, (B * SEQ_T, OBS_DIM), jnp.float32)
    cell_seq = jnp.zeros((1, B, H_REC), jnp.float32)
    logits_s, value_s, cell_out = actor_critic_forward(obs_seq, cell_seq, packed, N_ACT,
                                                       sequence_length=SEQ_T)
    jax.block_until_ready((logits_s, value_s, cell_out))
    assert logits_s.shape == (B * SEQ_T, N_ACT)
    assert value_s.shape == (B * SEQ_T,)
    assert cell_out.shape == (1, B, H_REC)

    ref_ls, ref_vs, ref_cs = reference_forward(obs_seq, cell_seq, params,
                                               sequence_length=SEQ_T)
    np.testing.assert_allclose(np.asarray(logits_s), np.asarray(ref_ls), atol=2e-2, rtol=2e-2)
    np.testing.assert_allclose(np.asarray(value_s), np.asarray(ref_vs), atol=2e-2, rtol=2e-2)
    np.testing.assert_allclose(np.asarray(cell_out), np.asarray(ref_cs), atol=2e-2, rtol=2e-2)

    print("KERNEL_OK")
</pallas_src>

<mosaic_0001>
module attributes {stable_mosaic.version = 11 : i64} {
  func.func @actor_critic_kernel(%arg0: memref<1x8x16xf32, #tpu.memory_space<vmem>>, %arg1: memref<8x32xf32, #tpu.memory_space<vmem>>, %arg2: memref<16x96xf32, #tpu.memory_space<vmem>>, %arg3: memref<32x96xf32, #tpu.memory_space<vmem>>, %arg4: memref<2x96xf32, #tpu.memory_space<vmem>>, %arg5: memref<32x32xf32, #tpu.memory_space<vmem>>, %arg6: memref<32x64xf32, #tpu.memory_space<vmem>>, %arg7: memref<64x128xf32, #tpu.memory_space<vmem>>, %arg8: memref<3x128xf32, #tpu.memory_space<vmem>>, %arg9: memref<1x8x128xf32, #tpu.memory_space<vmem>>, %arg10: memref<8x32xf32, #tpu.memory_space<vmem>>) attributes {dimension_semantics = [], scalar_prefetch = 0 : i64, scratch_operands = 0 : i64, tpu.core_type = #tpu.core_type<tc>} {
    %c0 = arith.constant 0 : index
    %c0_0 = arith.constant 0 : index
    %0 = vector.load %arg2[%c0, %c0_0] : memref<16x96xf32, #tpu.memory_space<vmem>>, vector<16x96xf32>
    %c0_1 = arith.constant 0 : index
    %c0_2 = arith.constant 0 : index
    %1 = vector.load %arg3[%c0_1, %c0_2] : memref<32x96xf32, #tpu.memory_space<vmem>>, vector<32x96xf32>
    %c0_3 = arith.constant 0 : index
    %c0_4 = arith.constant 0 : index
    %2 = vector.load %arg4[%c0_3, %c0_4] : memref<2x96xf32, #tpu.memory_space<vmem>>, vector<1x96xf32>
    %c1 = arith.constant 1 : index
    %c0_5 = arith.constant 0 : index
    %3 = vector.load %arg4[%c1, %c0_5] : memref<2x96xf32, #tpu.memory_space<vmem>>, vector<1x96xf32>
    %c0_6 = arith.constant 0 : index
    %c0_7 = arith.constant 0 : index
    %4 = vector.load %arg5[%c0_6, %c0_7] : memref<32x32xf32, #tpu.memory_space<vmem>>, vector<32x32xf32>
    %c0_8 = arith.constant 0 : index
    %c0_9 = arith.constant 0 : index
    %5 = vector.load %arg6[%c0_8, %c0_9] : memref<32x64xf32, #tpu.memory_space<vmem>>, vector<32x64xf32>
    %c0_10 = arith.constant 0 : index
    %c0_11 = arith.constant 0 : index
    %6 = vector.load %arg7[%c0_10, %c0_11] : memref<64x128xf32, #tpu.memory_space<vmem>>, vector<64x128xf32>
    %c0_12 = arith.constant 0 : index
    %c0_13 = arith.constant 0 : index
    %7 = vector.load %arg8[%c0_12, %c0_13] : memref<3x128xf32, #tpu.memory_space<vmem>>, vector<1x32xf32>
    %c1_14 = arith.constant 1 : index
    %c0_15 = arith.constant 0 : index
    %8 = vector.load %arg8[%c1_14, %c0_15] : memref<3x128xf32, #tpu.memory_space<vmem>>, vector<1x64xf32>
    %c2 = arith.constant 2 : index
    %c0_16 = arith.constant 0 : index
    %9 = vector.load %arg8[%c2, %c0_16] : memref<3x128xf32, #tpu.memory_space<vmem>>, vector<1x128xf32>
    %c0_17 = arith.constant 0 : index
    %c0_18 = arith.constant 0 : index
    %10 = vector.load %arg1[%c0_17, %c0_18] : memref<8x32xf32, #tpu.memory_space<vmem>>, vector<8x32xf32>
    %c0_i32 = arith.constant 0 : i32
    %11 = arith.index_cast %c0_i32 : i32 to index
    %c0_19 = arith.constant 0 : index
    %c0_20 = arith.constant 0 : index
    %12 = vector.load %arg0[%11, %c0_19, %c0_20] : memref<1x8x16xf32, #tpu.memory_space<vmem>>, vector<1x8x16xf32>
    %13 = vector.shape_cast %12 : vector<1x8x16xf32> to vector<8x16xf32>
    %cst = arith.constant dense<0.000000e+00> : vector<8x96xf32>
    %14 = tpu.matmul %13, %0, %cst {dimension_numbers = #tpu.dot_dimension_numbers<[1], [0], [0], [1], [0, 0, 1, 1], [], []>} : vector<8x16xf32>, vector<16x96xf32>, vector<8x96xf32> -> vector<8x96xf32>
    %15 = vector.broadcast %2 : vector<1x96xf32> to vector<8x96xf32>
    %16 = arith.addf %14, %15 : vector<8x96xf32>
    %cst_21 = arith.constant dense<0.000000e+00> : vector<8x96xf32>
    %17 = tpu.matmul %10, %1, %cst_21 {dimension_numbers = #tpu.dot_dimension_numbers<[1], [0], [0], [1], [0, 0, 1, 1], [], []>} : vector<8x32xf32>, vector<32x96xf32>, vector<8x96xf32> -> vector<8x96xf32>
    %18 = vector.broadcast %3 : vector<1x96xf32> to vector<8x96xf32>
    %19 = arith.addf %17, %18 : vector<8x96xf32>
    %20 = vector.extract_strided_slice %16 {offsets = [0, 0], sizes = [8, 32], strides = [1, 1]} : vector<8x96xf32> to vector<8x32xf32>
    %21 = vector.extract_strided_slice %19 {offsets = [0, 0], sizes = [8, 32], strides = [1, 1]} : vector<8x96xf32> to vector<8x32xf32>
    %22 = arith.addf %20, %21 : vector<8x32xf32>
    %23 = arith.negf %22 : vector<8x32xf32>
    %24 = math.exp %23 : vector<8x32xf32>
    %cst_22 = arith.constant 1.000000e+00 : f32
    %25 = vector.broadcast %cst_22 : f32 to vector<8x32xf32>
    %26 = arith.addf %25, %24 : vector<8x32xf32>
    %27 = arith.divf %25, %26 : vector<8x32xf32>
    %28 = vector.extract_strided_slice %16 {offsets = [0, 32], sizes = [8, 32], strides = [1, 1]} : vector<8x96xf32> to vector<8x32xf32>
    %29 = vector.extract_strided_slice %19 {offsets = [0, 32], sizes = [8, 32], strides = [1, 1]} : vector<8x96xf32> to vector<8x32xf32>
    %30 = arith.addf %28, %29 : vector<8x32xf32>
    %31 = arith.negf %30 : vector<8x32xf32>
    %32 = math.exp %31 : vector<8x32xf32>
    %cst_23 = arith.constant 1.000000e+00 : f32
    %33 = vector.broadcast %cst_23 : f32 to vector<8x32xf32>
    %34 = arith.addf %33, %32 : vector<8x32xf32>
    %35 = arith.divf %33, %34 : vector<8x32xf32>
    %36 = vector.extract_strided_slice %16 {offsets = [0, 64], sizes = [8, 32], strides = [1, 1]} : vector<8x96xf32> to vector<8x32xf32>
    %37 = vector.extract_strided_slice %19 {offsets = [0, 64], sizes = [8, 32], strides = [1, 1]} : vector<8x96xf32> to vector<8x32xf32>
    %38 = arith.mulf %27, %37 : vector<8x32xf32>
    %39 = arith.addf %36, %38 : vector<8x32xf32>
    %40 = math.tanh %39 : vector<8x32xf32>
    %cst_24 = arith.constant 1.000000e+00 : f32
    %41 = vector.broadcast %cst_24 : f32 to vector<8x32xf32>
    %42 = arith.subf %41, %35 : vector<8x32xf32>
    %43 = arith.mulf %42, %40 : vector<8x32xf32>
    %44 = arith.mulf %35, %10 : vector<8x32xf32>
    %45 = arith.addf %43, %44 : vector<8x32xf32>
    %cst_25 = arith.constant dense<0.000000e+00> : vector<8x32xf32>
    %46 = tpu.matmul %45, %4, %cst_25 {dimension_numbers = #tpu.dot_dimension_numbers<[1], [0], [0], [1], [0, 0, 1, 1], [], []>} : vector<8x32xf32>, vector<32x32xf32>, vector<8x32xf32> -> vector<8x32xf32>
    %47 = vector.broadcast %7 : vector<1x32xf32> to vector<8x32xf32>
    %48 = arith.addf %46, %47 : vector<8x32xf32>
    %cst_26 = arith.constant 0.000000e+00 : f32
    %49 = vector.broadcast %cst_26 : f32 to vector<8x32xf32>
    %50 = arith.maximumf %48, %49 : vector<8x32xf32>
    %cst_27 = arith.constant dense<0.000000e+00> : vector<8x64xf32>
    %51 = tpu.matmul %50, %5, %cst_27 {dimension_numbers = #tpu.dot_dimension_numbers<[1], [0], [0], [1], [0, 0, 1, 1], [], []>} : vector<8x32xf32>, vector<32x64xf32>, vector<8x64xf32> -> vector<8x64xf32>
    %52 = vector.broadcast %8 : vector<1x64xf32> to vector<8x64xf32>
    %53 = arith.addf %51, %52 : vector<8x64xf32>
    %cst_28 = arith.constant 0.000000e+00 : f32
    %54 = vector.broadcast %cst_28 : f32 to vector<8x64xf32>
    %55 = arith.maximumf %53, %54 : vector<8x64xf32>
    %cst_29 = arith.constant dense<0.000000e+00> : vector<8x128xf32>
    %56 = tpu.matmul %55, %6, %cst_29 {dimension_numbers = #tpu.dot_dimension_numbers<[1], [0], [0], [1], [0, 0, 1, 1], [], []>} : vector<8x64xf32>, vector<64x128xf32>, vector<8x128xf32> -> vector<8x128xf32>
    %57 = vector.broadcast %9 : vector<1x128xf32> to vector<8x128xf32>
    %58 = arith.addf %56, %57 : vector<8x128xf32>
    %59 = arith.index_cast %c0_i32 : i32 to index
    %c0_30 = arith.constant 0 : index
    %c0_31 = arith.constant 0 : index
    %60 = vector.load %arg9[%59, %c0_30, %c0_31] : memref<1x8x128xf32, #tpu.memory_space<vmem>>, vector<1x8x128xf32>
    %61 = vector.shape_cast %60 : vector<1x8x128xf32> to vector<8x128xf32>
    %62 = vector.shape_cast %58 : vector<8x128xf32> to vector<1x8x128xf32>
    tpu.vector_store %arg9[%59, %c0_30, %c0_31], %62 {strides = array<i32>} : memref<1x8x128xf32, #tpu.memory_space<vmem>>, vector<1x8x128xf32>,
    %c1_i32 = arith.constant 1 : i32
    %c0_32 = arith.constant 0 : index
    %c0_33 = arith.constant 0 : index
    %63 = vector.load %arg10[%c0_32, %c0_33] : memref<8x32xf32, #tpu.memory_space<vmem>>, vector<8x32xf32>
    tpu.vector_store %arg10[%c0_32, %c0_33], %45 {strides = array<i32>} : memref<8x32xf32, #tpu.memory_space<vmem>>, vector<8x32xf32>,
    return
  }
}

</mosaic_0001>

<llo_original>
// kernel: actor_critic_forward.1
$region0: #{actor_critic_forward.1}
  #allocation0 [shape = 'u32[]', space=smem, size = 0x4, offset = 0x4, fixed_abs, tag = 'smem constant byte address 0x4 - core index']
  #allocation1 [shape = 'u32[144,128]{1,0:T(1,128)}', space=vmem, size = 0x12000, scoped, tag = 'internal scratch']
  %s0 = inlined_call_operand.vmem [shape: f32[1,8,16], index: 0, kind: input, shape index: {}]
  %s1 = inlined_call_operand.vmem [shape: f32[8,32], index: 1, kind: input, shape index: {}, may-alias: {1,10}]
  %s2 = inlined_call_operand.vmem [shape: f32[16,96], index: 2, kind: input, shape index: {}]
  %s3 = inlined_call_operand.vmem [shape: f32[32,96], index: 3, kind: input, shape index: {}]
  %s4 = inlined_call_operand.hbm [shape: f32[2,96], index: 4, kind: input, shape index: {}]
  %s5 = inlined_call_operand.hbm [shape: f32[32,32], index: 5, kind: input, shape index: {}]
  %s6 = inlined_call_operand.hbm [shape: f32[32,64], index: 6, kind: input, shape index: {}]
  %s7 = inlined_call_operand.hbm [shape: f32[64,128], index: 7, kind: input, shape index: {}]
  %s8 = inlined_call_operand.hbm [shape: f32[3,128], index: 8, kind: input, shape index: {}]
  %s9 = inlined_call_operand.vmem [shape: f32[1,8,128], index: 9, kind: output, shape index: {0}]
  %s10 = inlined_call_operand.vmem [shape: f32[8,32], index: 10, kind: output, shape index: {1}, may-alias: {1,10}]
  %11 = xla_tuple %s9, %s10
  %s12 = sld [smem:[#allocation0]]
  $region74: #{actor_critic_forward.1} parent=0
    _
  %s14 = ssub.s32 1, %s12
  %s15 = scalar_select 0, %s14, %s12
  $region1: #{actor_critic_forward.1} parent=0
    #allocation2 [shape = 'u8[1024]{0}', space=vmem, size = 0x400, scoped, tag = 'input window, operand 4, single buffered']
    #allocation3 [shape = 's32[1]{0}', space=sflag, size = 0x4, scoped, tag = 'scoped memory for actor_critic_forward.1']
    #allocation4 [shape = 'u8[16384]{0}', space=vmem, size = 0x4000, scoped, tag = 'input window, operand 5, single buffered']
    #allocation5 [shape = 's32[1]{0}', space=sflag, size = 0x4, scoped, tag = 'scoped memory for actor_critic_forward.1']
    #allocation6 [shape = 'u8[16384]{0}', space=vmem, size = 0x4000, scoped, tag = 'input window, operand 6, single buffered']
    #allocation7 [shape = 'u8[32768]{0}', space=vmem, size = 0x8000, scoped, tag = 'input window, operand 7, single buffered']
    #allocation8 [shape = 's32[1]{0}', space=sflag, size = 0x4, scoped, tag = 'scoped memory for actor_critic_forward.1']
    #allocation9 [shape = 'u8[2048]{0}', space=vmem, size = 0x800, scoped, tag = 'input window, operand 8, single buffered']
    %16 = vsyncpa [#allocation3], 0
    %17 = vsyncpa [#allocation5], 0
    %18 = vsyncpa [#allocation8], 0
    // Predicated region
    $region2: #{actor_critic_forward.1} parent=1 // pred_check
      _
    $region3: #{actor_critic_forward.1} parent=1 // pred_check_branch
      %20 = sbr.rel (0) target = $region5
    $region4: #{actor_critic_forward.1} parent=1 // pred_region
      _
    $region5: #{actor_critic_forward.1} parent=1 // pred_fallthru
      _
    // Predicated region
    $region6: #{actor_critic_forward.1} parent=1 // pred_check
      _
    $region7: #{actor_critic_forward.1} parent=1 // pred_check_branch
      %22 = sbr.rel (0) target = $region9
    $region8: #{actor_critic_forward.1} parent=1 // pred_region
      _
    $region9: #{actor_critic_forward.1} parent=1 // pred_fallthru
      _
    // Predicated region
    $region10: #{actor_critic_forward.1} parent=1 // pred_check
      _
    $region11: #{actor_critic_forward.1} parent=1 // pred_check_branch
      %24 = sbr.rel (0) target = $region13
    $region12: #{actor_critic_forward.1} parent=1 // pred_region
      _
    $region13: #{actor_critic_forward.1} parent=1 // pred_fallthru
      _
    // Predicated region
    $region14: #{actor_critic_forward.1} parent=1 // pred_check
      _
    $region15: #{actor_critic_forward.1} parent=1 // pred_check_branch
      %26 = sbr.rel (0) target = $region17
    $region16: #{actor_critic_forward.1} parent=1 // pred_region
      _
    $region17: #{actor_critic_forward.1} parent=1 // pred_fallthru
      _
    // Predicated region
    $region18: #{actor_critic_forward.1} parent=1 // pred_check
      _
    $region19: #{actor_critic_forward.1} parent=1 // pred_check_branch
      %28 = sbr.rel (0) target = $region21
    $region20: #{actor_critic_forward.1} parent=1 // pred_region
      %s30 = ssub.s32 32, 32
      %31 = vsyncadd [#allocation3], %s30
      %s33 = sshll.u32 [#allocation2], 4
      %s34 = int_to_ptr.vmem [resolvable:$true] %s33
      %36 = dma.hbm_to_vmem [thread:$0]  %s4, 32, %s34, [#allocation3]
    $region21: #{actor_critic_forward.1} parent=1 // pred_fallthru
      _
    // Predicated region
    $region22: #{actor_critic_forward.1} parent=1 // pred_check
      _
    $region23: #{actor_critic_forward.1} parent=1 // pred_check_branch
      %38 = sbr.rel (0) target = $region25
    $region24: #{actor_critic_forward.1} parent=1 // pred_region
      %s40 = ssub.s32 512, 512
      %41 = vsyncadd [#allocation5], %s40
      %s42 = sshll.u32 [#allocation4], 4
      %s43 = int_to_ptr.vmem [resolvable:$true] %s42
      %48 = dma.hbm_to_vmem [thread:$0]  %s5, 512, %s43, [#allocation5], 128, 128, 8
    $region25: #{actor_critic_forward.1} parent=1 // pred_fallthru
      _
    // Predicated region
    $region26: #{actor_critic_forward.1} parent=1 // pred_check
      _
    $region27: #{actor_critic_forward.1} parent=1 // pred_check_branch
      %50 = sbr.rel (0) target = $region29
    $region28: #{actor_critic_forward.1} parent=1 // pred_region
      %s52 = ssub.s32 512, 512
      %53 = vsyncadd [#allocation5], %s52
      %s54 = sshll.u32 [#allocation6], 4
      %s55 = int_to_ptr.vmem [resolvable:$true] %s54
      %60 = dma.hbm_to_vmem [thread:$0]  %s6, 512, %s55, [#allocation5], 128, 128, 8
    $region29: #{actor_critic_forward.1} parent=1 // pred_fallthru
      _
    // Predicated region
    $region30: #{actor_critic_forward.1} parent=1 // pred_check
      _
    $region31: #{actor_critic_forward.1} parent=1 // pred_check_branch
      %62 = sbr.rel (0) target = $region33
    $region32: #{actor_critic_forward.1} parent=1 // pred_region
      %s64 = ssub.s32 1024, 1024
      %65 = vsyncadd [#allocation8], %s64
      %s66 = sshll.u32 [#allocation7], 4
      %s67 = int_to_ptr.vmem [resolvable:$true] %s66
      %72 = dma.hbm_to_vmem [thread:$0]  %s7, 1024, %s67, [#allocation8], 128, 128, 8
    $region33: #{actor_critic_forward.1} parent=1 // pred_fallthru
      _
    // Predicated region
    $region34: #{actor_critic_forward.1} parent=1 // pred_check
      _
    $region35: #{actor_critic_forward.1} parent=1 // pred_check_branch
      %74 = sbr.rel (0) target = $region37
    $region36: #{actor_critic_forward.1} parent=1 // pred_region
      %s76 = ssub.s32 64, 64
      %77 = vsyncadd [#allocation8], %s76
      %s79 = sshll.u32 [#allocation9], 4
      %s80 = int_to_ptr.vmem [resolvable:$true] %s79
      %82 = dma.hbm_to_vmem [thread:$0]  %s8, 64, %s80, [#allocation8]
    $region37: #{actor_critic_forward.1} parent=1 // pred_fallthru
      _
    // Predicated region
    $region38: #{actor_critic_forward.1} parent=1 // pred_check
      _
    $region39: #{actor_critic_forward.1} parent=1 // pred_check_branch
      %84 = sbr.rel (0) target = $region41
    $region40: #{actor_critic_forward.1} parent=1 // pred_region
      %85 = dma.done [#allocation3], 32
    $region41: #{actor_critic_forward.1} parent=1 // pred_fallthru
      _
    // Predicated region
    $region42: #{actor_critic_forward.1} parent=1 // pred_check
      _
    $region43: #{actor_critic_forward.1} parent=1 // pred_check_branch
      %87 = sbr.rel (0) target = $region45
    $region44: #{actor_critic_forward.1} parent=1 // pred_region
      %88 = dma.done [#allocation5], 512
    $region45: #{actor_critic_forward.1} parent=1 // pred_fallthru
      _
    // Predicated region
    $region46: #{actor_critic_forward.1} parent=1 // pred_check
      _
    $region47: #{actor_critic_forward.1} parent=1 // pred_check_branch
      %90 = sbr.rel (0) target = $region49
    $region48: #{actor_critic_forward.1} parent=1 // pred_region
      %91 = dma.done [#allocation5], 512
    $region49: #{actor_critic_forward.1} parent=1 // pred_fallthru
      _
    // Predicated region
    $region50: #{actor_critic_forward.1} parent=1 // pred_check
      _
    $region51: #{actor_critic_forward.1} parent=1 // pred_check_branch
      %93 = sbr.rel (0) target = $region53
    $region52: #{actor_critic_forward.1} parent=1 // pred_region
      %94 = dma.done [#allocation8], 1024
    $region53: #{actor_critic_forward.1} parent=1 // pred_fallthru
      _
    // Predicated region
    $region54: #{actor_critic_forward.1} parent=1 // pred_check
      _
    $region55: #{actor_critic_forward.1} parent=1 // pred_check_branch
      %96 = sbr.rel (0) target = $region57
    $region56: #{actor_critic_forward.1} parent=1 // pred_region
      %97 = dma.done [#allocation8], 64
    $region57: #{actor_critic_forward.1} parent=1 // pred_fallthru
      _
    %v98 = vld [vmem:[%s2] sm:$0xff]
    %v99 = vld [vmem:[%s2 + $0x8] sm:$0xff]
    %v100 = vld [vmem:[%s3] sm:$0xff]
    %v101 = vld [vmem:[%s3 + $0x8] sm:$0xff]
    %v102 = vld [vmem:[%s3 + $0x10] sm:$0xff]
    %v103 = vld [vmem:[%s3 + $0x18] sm:$0xff]
    %v104 = vld [vmem:[#allocation2] sm:$0x1]
    %v105 = vld [vmem:[#allocation2 + $0x1] sm:$0x1]
    %v106 = vld [vmem:[#allocation4] sm:$0xff]
    %v107 = vld [vmem:[#allocation4 + $0x8] sm:$0xff]
    %v108 = vld [vmem:[#allocation4 + $0x10] sm:$0xff]
    %v109 = vld [vmem:[#allocation4 + $0x18] sm:$0xff]
    %v110 = vld [vmem:[#allocation6] sm:$0xff]
    %v111 = vld [vmem:[#allocation6 + $0x8] sm:$0xff]
    %v112 = vld [vmem:[#allocation6 + $0x10] sm:$0xff]
    %v113 = vld [vmem:[#allocation6 + $0x18] sm:$0xff]
    %v114 = vld [vmem:[#allocation7] sm:$0xff]
    %v115 = vld [vmem:[#allocation7 + $0x8] sm:$0xff]
    %v116 = vld [vmem:[#allocation7 + $0x10] sm:$0xff]
    %v117 = vld [vmem:[#allocation7 + $0x18] sm:$0xff]
    %v118 = vld [vmem:[#allocation7 + $0x20] sm:$0xff]
    %v119 = vld [vmem:[#allocation7 + $0x28] sm:$0xff]
    %v120 = vld [vmem:[#allocation7 + $0x30] sm:$0xff]
    %v121 = vld [vmem:[#allocation7 + $0x38] sm:$0xff]
    %v122 = vld [vmem:[#allocation9] sm:$0x1]
    %v123 = vld [vmem:[#allocation9 + $0x1] sm:$0x1]
    %v124 = vld [vmem:[#allocation9 + $0x2] sm:$0x1]
    %v125 = vld [vmem:[%s1] sm:$0xff]
    %v126 = vld [vmem:[%s0] sm:$0xff]
    %v127 = vlaneseq
    %v128 = vshrl.u32 %v127, 7
    %v129 = vsub.s32 0, %v128
    %v130 = vrot.slane %v104, %v129
    %vm131 = vcmask 130048
    %v133 = vsel %vm131, %v126, 0
    %135 = vmatprep.subr.mxu0 0.0
    %136 = vmatpush1.msra.mxu0 %v98
    %137 = vmatprep.subr.mxu0 0.0
    %138 = vmatpush1.msra.mxu0 %v99
    %139 = vmatprep.subr.mxu0 0.0
    %140 = vmatpush1.msra.mxu0 0.0
    %141 = vmatprep.subr.mxu0 0.0
    %142 = vmatpush1.msra.mxu0 0.0
    %143 = vmatprep.subr.mxu0 0.0
    %144 = vmatpush1.msra.mxu0 0.0
    %145 = vmatprep.subr.mxu0 0.0
    %146 = vmatpush1.msra.mxu0 0.0
    %147 = vmatprep.subr.mxu0 0.0
    %148 = vmatpush1.msra.mxu0 0.0
    %149 = vmatprep.subr.mxu0 0.0
    %150 = vmatpush1.msra.mxu0 0.0
    %151 = vmatprep.subr.mxu0 0.0
    %152 = vmatpush1.msra.mxu0 0.0
    %153 = vmatprep.subr.mxu0 0.0
    %154 = vmatpush1.msra.mxu0 0.0
    %155 = vmatprep.subr.mxu0 0.0
    %156 = vmatpush1.msra.mxu0 0.0
    %157 = vmatprep.subr.mxu0 0.0
    %158 = vmatpush1.msra.mxu0 0.0
    %159 = vmatprep.subr.mxu0 0.0
    %160 = vmatpush1.msra.mxu0 0.0
    %161 = vmatprep.subr.mxu0 0.0
    %162 = vmatpush1.msra.mxu0 0.0
    %163 = vmatprep.subr.mxu0 0.0
    %164 = vmatpush1.msra.mxu0 0.0
    %165 = vmatprep.subr.mxu0 0.0
    %166 = vmatpush1.msra.mxu0 0.0
    %167 = vmatprep.subr.mxu0 0.0
    %168 = vmatpush1.msra.mxu0 0.0
    %169 = vmatprep.subr.mxu0 0.0
    %170 = vmatpush1.msra.mxu0 0.0
    %171 = vmatprep.subr.mxu0 0.0
    %172 = vmatpush1.msra.mxu0 0.0
    %173 = vmatprep.subr.mxu0 0.0
    %174 = vmatpush1.msra.mxu0 0.0
    %175 = vmatprep.subr.mxu0 0.0
    %176 = vmatpush1.msra.mxu0 0.0
    %177 = vmatprep.subr.mxu0 0.0
    %178 = vmatpush1.msra.mxu0 0.0
    %179 = vmatprep.subr.mxu0 0.0
    %180 = vmatpush1.msra.mxu0 0.0
    %181 = vmatprep.subr.mxu0 0.0
    %182 = vmatpush1.msra.mxu0 0.0
    %183 = vmatprep.subr.mxu0 0.0
    %184 = vmatpush1.msra.mxu0 0.0
    %185 = vmatprep.subr.mxu0 0.0
    %186 = vmatpush1.msra.mxu0 0.0
    %187 = vmatprep.subr.mxu0 0.0
    %188 = vmatpush1.msra.mxu0 0.0
    %189 = vmatprep.subr.mxu0 0.0
    %190 = vmatpush1.msra.mxu0 0.0
    %191 = vmatprep.subr.mxu0 0.0
    %192 = vmatpush1.msra.mxu0 0.0
    %193 = vmatprep.subr.mxu0 0.0
    %194 = vmatpush1.msra.mxu0 0.0
    %195 = vmatprep.subr.mxu0 0.0
    %196 = vmatpush1.msra.mxu0 0.0
    %197 = vmatprep.subr.mxu0 0.0
    %198 = vmatpush1.msra.mxu0 0.0
    %199 = vmatprep.mubr.f32.mxu0 0.0
    %200 = vmatmul.mubr.f32.gmra.mrb[0].mxu0 %v133
    %v201 = vpop.f32.mrb[0].mxu0
    %v202 = vadd.f32 %v130, %v201
    %v203 = vpop.f32.mrb[0].mxu0
    %204 = vdwg.mxu0
    %v205 = vlaneseq
    %v206 = vshrl.u32 %v205, 7
    %v207 = vsub.s32 0, %v206
    %v208 = vrot.slane %v105, %v207
    %vm209 = vcmask 261120
    %v211 = vsel %vm209, %v125, 0
    %213 = vmatprep.subr.mxu0 0.0
    %214 = vmatpush1.msra.mxu0 %v100
    %215 = vmatprep.subr.mxu0 0.0
    %216 = vmatpush1.msra.mxu0 %v101
    %217 = vmatprep.subr.mxu0 0.0
    %218 = vmatpush1.msra.mxu0 %v102
    %219 = vmatprep.subr.mxu0 0.0
    %220 = vmatpush1.msra.mxu0 %v103
    %221 = vmatprep.subr.mxu0 0.0
    %222 = vmatpush1.msra.mxu0 0.0
    %223 = vmatprep.subr.mxu0 0.0
    %224 = vmatpush1.msra.mxu0 0.0
    %225 = vmatprep.subr.mxu0 0.0
    %226 = vmatpush1.msra.mxu0 0.0
    %227 = vmatprep.subr.mxu0 0.0
    %228 = vmatpush1.msra.mxu0 0.0
    %229 = vmatprep.subr.mxu0 0.0
    %230 = vmatpush1.msra.mxu0 0.0
    %231 = vmatprep.subr.mxu0 0.0
    %232 = vmatpush1.msra.mxu0 0.0
    %233 = vmatprep.subr.mxu0 0.0
    %234 = vmatpush1.msra.mxu0 0.0
    %235 = vmatprep.subr.mxu0 0.0
    %236 = vmatpush1.msra.mxu0 0.0
    %237 = vmatprep.subr.mxu0 0.0
    %238 = vmatpush1.msra.mxu0 0.0
    %239 = vmatprep.subr.mxu0 0.0
    %240 = vmatpush1.msra.mxu0 0.0
    %241 = vmatprep.subr.mxu0 0.0
    %242 = vmatpush1.msra.mxu0 0.0
    %243 = vmatprep.subr.mxu0 0.0
    %244 = vmatpush1.msra.mxu0 0.0
    %245 = vmatprep.subr.mxu0 0.0
    %246 = vmatpush1.msra.mxu0 0.0
    %247 = vmatprep.subr.mxu0 0.0
    %248 = vmatpush1.msra.mxu0 0.0
    %249 = vmatprep.subr.mxu0 0.0
    %250 = vmatpush1.msra.mxu0 0.0
    %251 = vmatprep.subr.mxu0 0.0
    %252 = vmatpush1.msra.mxu0 0.0
    %253 = vmatprep.subr.mxu0 0.0
    %254 = vmatpush1.msra.mxu0 0.0
    %255 = vmatprep.subr.mxu0 0.0
    %256 = vmatpush1.msra.mxu0 0.0
    %257 = vmatprep.subr.mxu0 0.0
    %258 = vmatpush1.msra.mxu0 0.0
    %259 = vmatprep.subr.mxu0 0.0
    %260 = vmatpush1.msra.mxu0 0.0
    %261 = vmatprep.subr.mxu0 0.0
    %262 = vmatpush1.msra.mxu0 0.0
    %263 = vmatprep.subr.mxu0 0.0
    %264 = vmatpush1.msra.mxu0 0.0
    %265 = vmatprep.subr.mxu0 0.0
    %266 = vmatpush1.msra.mxu0 0.0
    %267 = vmatprep.subr.mxu0 0.0
    %268 = vmatpush1.msra.mxu0 0.0
    %269 = vmatprep.subr.mxu0 0.0
    %270 = vmatpush1.msra.mxu0 0.0
    %271 = vmatprep.subr.mxu0 0.0
    %272 = vmatpush1.msra.mxu0 0.0
    %273 = vmatprep.subr.mxu0 0.0
    %274 = vmatpush1.msra.mxu0 0.0
    %275 = vmatprep.subr.mxu0 0.0
    %276 = vmatpush1.msra.mxu0 0.0
    %277 = vmatprep.mubr.f32.mxu0 0.0
    %278 = vmatmul.mubr.f32.gmra.mrb[0].mxu0 %v211
    %v279 = vpop.f32.mrb[0].mxu0
    %v280 = vadd.f32 %v208, %v279
    %v281 = vpop.f32.mrb[0].mxu0
    %282 = vdwg.mxu0
    %v283 = vadd.f32 %v202, %v280
    %v284 = vxor.u32 %v283, 2147483648
    %v285 = vmul.f32 %v284, 1.442695
    %v286 = vpow.pop %v285
    %v287 = vadd.f32 %v286, 1.0
    %v288 = vrcp.pop %v287
    %v289 = vmul.f32 1.0, %v288
    %291 = vrot.lane.b32.xlu0 %v280, 64
    %v292 = vpop.permute.xlu0 %291
    %v294 = vmul.f32 %v289, %v292
    %296 = vrot.lane.b32.xlu0 %v294, 64
    %v297 = vpop.permute.xlu0 %296
    %v299 = vadd.f32 %v202, %v297
    %v300 = vtanh.pop %v299
    %v301 = vsub.f32 1.0, %v289
    %303 = vrot.lane.b32.xlu0 %v300, 96
    %v304 = vpop.permute.xlu0 %303
    %v306 = vmul.f32 %v301, %v304
    %307 = vrot.lane.b32.xlu0 %v125, 32
    %v308 = vpop.permute.xlu0 %307
    %v310 = vmul.f32 %v289, %v308
    %v311 = vadd.f32 %v306, %v310
    %v312 = vlaneseq
    %v313 = vshrl.u32 %v312, 7
    %v314 = vsub.s32 0, %v313
    %v315 = vrot.slane %v122, %v314
    %317 = vrot.lane.b32.xlu0 %v311, 96
    %v318 = vpop.permute.xlu0 %317
    %v319 = vsel %vm209, %v318, 0
    %321 = vmatprep.subr.mxu0 0.0
    %322 = vmatpush1.msra.mxu0 %v106
    %323 = vmatprep.subr.mxu0 0.0
    %324 = vmatpush1.msra.mxu0 %v107
    %325 = vmatprep.subr.mxu0 0.0
    %326 = vmatpush1.msra.mxu0 %v108
    %327 = vmatprep.subr.mxu0 0.0
    %328 = vmatpush1.msra.mxu0 %v109
    %329 = vmatprep.subr.mxu0 0.0
    %330 = vmatpush1.msra.mxu0 0.0
    %331 = vmatprep.subr.mxu0 0.0
    %332 = vmatpush1.msra.mxu0 0.0
    %333 = vmatprep.subr.mxu0 0.0
    %334 = vmatpush1.msra.mxu0 0.0
    %335 = vmatprep.subr.mxu0 0.0
    %336 = vmatpush1.msra.mxu0 0.0
    %337 = vmatprep.subr.mxu0 0.0
    %338 = vmatpush1.msra.mxu0 0.0
    %339 = vmatprep.subr.mxu0 0.0
    %340 = vmatpush1.msra.mxu0 0.0
    %341 = vmatprep.subr.mxu0 0.0
    %342 = vmatpush1.msra.mxu0 0.0
    %343 = vmatprep.subr.mxu0 0.0
    %344 = vmatpush1.msra.mxu0 0.0
    %345 = vmatprep.subr.mxu0 0.0
    %346 = vmatpush1.msra.mxu0 0.0
    %347 = vmatprep.subr.mxu0 0.0
    %348 = vmatpush1.msra.mxu0 0.0
    %349 = vmatprep.subr.mxu0 0.0
    %350 = vmatpush1.msra.mxu0 0.0
    %351 = vmatprep.subr.mxu0 0.0
    %352 = vmatpush1.msra.mxu0 0.0
    %353 = vmatprep.subr.mxu0 0.0
    %354 = vmatpush1.msra.mxu0 0.0
    %355 = vmatprep.subr.mxu0 0.0
    %356 = vmatpush1.msra.mxu0 0.0
    %357 = vmatprep.subr.mxu0 0.0
    %358 = vmatpush1.msra.mxu0 0.0
    %359 = vmatprep.subr.mxu0 0.0
    %360 = vmatpush1.msra.mxu0 0.0
    %361 = vmatprep.subr.mxu0 0.0
    %362 = vmatpush1.msra.mxu0 0.0
    %363 = vmatprep.subr.mxu0 0.0
    %364 = vmatpush1.msra.mxu0 0.0
    %365 = vmatprep.subr.mxu0 0.0
    %366 = vmatpush1.msra.mxu0 0.0
    %367 = vmatprep.subr.mxu0 0.0
    %368 = vmatpush1.msra.mxu0 0.0
    %369 = vmatprep.subr.mxu0 0.0
    %370 = vmatpush1.msra.mxu0 0.0
    %371 = vmatprep.subr.mxu0 0.0
    %372 = vmatpush1.msra.mxu0 0.0
    %373 = vmatprep.subr.mxu0 0.0
    %374 = vmatpush1.msra.mxu0 0.0
    %375 = vmatprep.subr.mxu0 0.0
    %376 = vmatpush1.msra.mxu0 0.0
    %377 = vmatprep.subr.mxu0 0.0
    %378 = vmatpush1.msra.mxu0 0.0
    %379 = vmatprep.subr.mxu0 0.0
    %380 = vmatpush1.msra.mxu0 0.0
    %381 = vmatprep.subr.mxu0 0.0
    %382 = vmatpush1.msra.mxu0 0.0
    %383 = vmatprep.subr.mxu0 0.0
    %384 = vmatpush1.msra.mxu0 0.0
    %385 = vmatprep.mubr.f32.mxu0 0.0
    %386 = vmatmul.mubr.f32.gmra.mrb[0].mxu0 %v319
    %v387 = vpop.f32.mrb[0].mxu0
    %v388 = vadd.f32 %v315, %v387
    %v389 = vpop.f32.mrb[0].mxu0
    %390 = vdwg.mxu0
    %v391 = vmax.f32 %v388, 0.0
    %v392 = vlaneseq
    %v393 = vshrl.u32 %v392, 7
    %v394 = vsub.s32 0, %v393
    %v395 = vrot.slane %v123, %v394
    %v397 = vsel %vm209, %v391, 0
    %399 = vmatprep.subr.mxu0 0.0
    %400 = vmatpush1.msra.mxu0 %v110
    %401 = vmatprep.subr.mxu0 0.0
    %402 = vmatpush1.msra.mxu0 %v111
    %403 = vmatprep.subr.mxu0 0.0
    %404 = vmatpush1.msra.mxu0 %v112
    %405 = vmatprep.subr.mxu0 0.0
    %406 = vmatpush1.msra.mxu0 %v113
    %407 = vmatprep.subr.mxu0 0.0
    %408 = vmatpush1.msra.mxu0 0.0
    %409 = vmatprep.subr.mxu0 0.0
    %410 = vmatpush1.msra.mxu0 0.0
    %411 = vmatprep.subr.mxu0 0.0
    %412 = vmatpush1.msra.mxu0 0.0
    %413 = vmatprep.subr.mxu0 0.0
    %414 = vmatpush1.msra.mxu0 0.0
    %415 = vmatprep.subr.mxu0 0.0
    %416 = vmatpush1.msra.mxu0 0.0
    %417 = vmatprep.subr.mxu0 0.0
    %418 = vmatpush1.msra.mxu0 0.0
    %419 = vmatprep.subr.mxu0 0.0
    %420 = vmatpush1.msra.mxu0 0.0
    %421 = vmatprep.subr.mxu0 0.0
    %422 = vmatpush1.msra.mxu0 0.0
    %423 = vmatprep.subr.mxu0 0.0
    %424 = vmatpush1.msra.mxu0 0.0
    %425 = vmatprep.subr.mxu0 0.0
    %426 = vmatpush1.msra.mxu0 0.0
    %427 = vmatprep.subr.mxu0 0.0
    %428 = vmatpush1.msra.mxu0 0.0
    %429 = vmatprep.subr.mxu0 0.0
    %430 = vmatpush1.msra.mxu0 0.0
    %431 = vmatprep.subr.mxu0 0.0
    %432 = vmatpush1.msra.mxu0 0.0
    %433 = vmatprep.subr.mxu0 0.0
    %434 = vmatpush1.msra.mxu0 0.0
    %435 = vmatprep.subr.mxu0 0.0
    %436 = vmatpush1.msra.mxu0 0.0
    %437 = vmatprep.subr.mxu0 0.0
    %438 = vmatpush1.msra.mxu0 0.0
    %439 = vmatprep.subr.mxu0 0.0
    %440 = vmatpush1.msra.mxu0 0.0
    %441 = vmatprep.subr.mxu0 0.0
    %442 = vmatpush1.msra.mxu0 0.0
    %443 = vmatprep.subr.mxu0 0.0
    %444 = vmatpush1.msra.mxu0 0.0
    %445 = vmatprep.subr.mxu0 0.0
    %446 = vmatpush1.msra.mxu0 0.0
    %447 = vmatprep.subr.mxu0 0.0
    %448 = vmatpush1.msra.mxu0 0.0
    %449 = vmatprep.subr.mxu0 0.0
    %450 = vmatpush1.msra.mxu0 0.0
    %451 = vmatprep.subr.mxu0 0.0
    %452 = vmatpush1.msra.mxu0 0.0
    %453 = vmatprep.subr.mxu0 0.0
    %454 = vmatpush1.msra.mxu0 0.0
    %455 = vmatprep.subr.mxu0 0.0
    %456 = vmatpush1.msra.mxu0 0.0
    %457 = vmatprep.subr.mxu0 0.0
    %458 = vmatpush1.msra.mxu0 0.0
    %459 = vmatprep.subr.mxu0 0.0
    %460 = vmatpush1.msra.mxu0 0.0
    %461 = vmatprep.subr.mxu0 0.0
    %462 = vmatpush1.msra.mxu0 0.0
    %463 = vmatprep.mubr.f32.mxu0 0.0
    %464 = vmatmul.mubr.f32.gmra.mrb[0].mxu0 %v397
    %v465 = vpop.f32.mrb[0].mxu0
    %v466 = vadd.f32 %v395, %v465
    %v467 = vpop.f32.mrb[0].mxu0
    %468 = vdwg.mxu0
    %v469 = vmax.f32 %v466, 0.0
    %v470 = vlaneseq
    %v471 = vshrl.u32 %v470, 7
    %v472 = vsub.s32 0, %v471
    %v473 = vrot.slane %v124, %v472
    %vm474 = vcmask 523264
    %v476 = vsel %vm474, %v469, 0
    %478 = vmatprep.subr.mxu0 0.0
    %479 = vmatpush1.msra.mxu0 %v114
    %480 = vmatprep.subr.mxu0 0.0
    %481 = vmatpush1.msra.mxu0 %v115
    %482 = vmatprep.subr.mxu0 0.0
    %483 = vmatpush1.msra.mxu0 %v116
    %484 = vmatprep.subr.mxu0 0.0
    %485 = vmatpush1.msra.mxu0 %v117
    %486 = vmatprep.subr.mxu0 0.0
    %487 = vmatpush1.msra.mxu0 %v118
    %488 = vmatprep.subr.mxu0 0.0
    %489 = vmatpush1.msra.mxu0 %v119
    %490 = vmatprep.subr.mxu0 0.0
    %491 = vmatpush1.msra.mxu0 %v120
    %492 = vmatprep.subr.mxu0 0.0
    %493 = vmatpush1.msra.mxu0 %v121
    %494 = vmatprep.subr.mxu0 0.0
    %495 = vmatpush1.msra.mxu0 0.0
    %496 = vmatprep.subr.mxu0 0.0
    %497 = vmatpush1.msra.mxu0 0.0
    %498 = vmatprep.subr.mxu0 0.0
    %499 = vmatpush1.msra.mxu0 0.0
    %500 = vmatprep.subr.mxu0 0.0
    %501 = vmatpush1.msra.mxu0 0.0
    %502 = vmatprep.subr.mxu0 0.0
    %503 = vmatpush1.msra.mxu0 0.0
    %504 = vmatprep.subr.mxu0 0.0
    %505 = vmatpush1.msra.mxu0 0.0
    %506 = vmatprep.subr.mxu0 0.0
    %507 = vmatpush1.msra.mxu0 0.0
    %508 = vmatprep.subr.mxu0 0.0
    %509 = vmatpush1.msra.mxu0 0.0
    %510 = vmatprep.subr.mxu0 0.0
    %511 = vmatpush1.msra.mxu0 0.0
    %512 = vmatprep.subr.mxu0 0.0
    %513 = vmatpush1.msra.mxu0 0.0
    %514 = vmatprep.subr.mxu0 0.0
    %515 = vmatpush1.msra.mxu0 0.0
    %516 = vmatprep.subr.mxu0 0.0
    %517 = vmatpush1.msra.mxu0 0.0
    %518 = vmatprep.subr.mxu0 0.0
    %519 = vmatpush1.msra.mxu0 0.0
    %520 = vmatprep.subr.mxu0 0.0
    %521 = vmatpush1.msra.mxu0 0.0
    %522 = vmatprep.subr.mxu0 0.0
    %523 = vmatpush1.msra.mxu0 0.0
    %524 = vmatprep.subr.mxu0 0.0
    %525 = vmatpush1.msra.mxu0 0.0
    %526 = vmatprep.subr.mxu0 0.0
    %527 = vmatpush1.msra.mxu0 0.0
    %528 = vmatprep.subr.mxu0 0.0
    %529 = vmatpush1.msra.mxu0 0.0
    %530 = vmatprep.subr.mxu0 0.0
    %531 = vmatpush1.msra.mxu0 0.0
    %532 = vmatprep.subr.mxu0 0.0
    %533 = vmatpush1.msra.mxu0 0.0
    %534 = vmatprep.subr.mxu0 0.0
    %535 = vmatpush1.msra.mxu0 0.0
    %536 = vmatprep.subr.mxu0 0.0
    %537 = vmatpush1.msra.mxu0 0.0
    %538 = vmatprep.subr.mxu0 0.0
    %539 = vmatpush1.msra.mxu0 0.0
    %540 = vmatprep.subr.mxu0 0.0
    %541 = vmatpush1.msra.mxu0 0.0
    %542 = vmatprep.mubr.f32.mxu0 0.0
    %543 = vmatmul.mubr.f32.gmra.mrb[0].mxu0 %v476
    %v544 = vpop.f32.mrb[0].mxu0
    %v545 = vadd.f32 %v473, %v544
    %v546 = vpop.f32.mrb[0].mxu0
    %547 = vdwg.mxu0
    %548 = vst [vmem:[%s9] sm:$0xff] %v545
    %550 = vst.msk [vmem:[%s10] sm:$0xff] %vm209, %v318
    // Predicated region
    $region58: #{actor_critic_forward.1} parent=1 // pred_check
      _
    $region59: #{actor_critic_forward.1} parent=1 // pred_check_branch
      %552 = sbr.rel (0) target = $region61
    $region60: #{actor_critic_forward.1} parent=1 // pred_region
      _
    $region61: #{actor_critic_forward.1} parent=1 // pred_fallthru
      _
    // Predicated region
    $region62: #{actor_critic_forward.1} parent=1 // pred_check
      _
    $region63: #{actor_critic_forward.1} parent=1 // pred_check_branch
      %554 = sbr.rel (0) target = $region65
    $region64: #{actor_critic_forward.1} parent=1 // pred_region
      _
    $region65: #{actor_critic_forward.1} parent=1 // pred_fallthru
      _
    // Predicated region
    $region66: #{actor_critic_forward.1} parent=1 // pred_check
      _
    $region67: #{actor_critic_forward.1} parent=1 // pred_check_branch
      %556 = sbr.rel (0) target = $region69
    $region68: #{actor_critic_forward.1} parent=1 // pred_region
      _
    $region69: #{actor_critic_forward.1} parent=1 // pred_fallthru
      _
    // Predicated region
    $region70: #{actor_critic_forward.1} parent=1 // pred_check
      _
    $region71: #{actor_critic_forward.1} parent=1 // pred_check_branch
      %558 = sbr.rel (0) target = $region73
    $region72: #{actor_critic_forward.1} parent=1 // pred_region
      _
    $region73: #{actor_critic_forward.1} parent=1 // pred_fallthru
      _
    %559 = vsyncpa [#allocation3], 1
    %560 = vsyncpa [#allocation5], 1
    %561 = vsyncpa [#allocation8], 1

</llo_original>
